<compile_context>
chip_gen: v7x
topology: tpu7x:2x2x1
jax: 0.10.0
libtpu: 0.0.40
codegen_flags: <defaults>
</compile_context>

<pallas_src>
import jax
import jax.numpy as jnp
from jax.experimental import pallas as pl
from jax.experimental.pallas import tpu as pltpu

_LANE_CHOICES = (1024, 512, 256, 128)     # lane-dense last dim (multiple of 128)
_BYTE_BUDGET = 4 * 1024 * 1024            # ~4 MiB per in/out tile buffer


def _identity_kernel(x_ref, o_ref):
    # Whole-tile load + store (identity elementwise pass, full-width vst).
    o_ref[...] = x_ref[...]


def _sublane_multiple(itemsize):
    # Packed dtypes need taller sublane blocks: f32 -> 8, bf16 -> 16, int8/fp8 -> 32.
    return {4: 8, 2: 16, 1: 32}.get(itemsize, 8)


def _pick_row_tile(rows, lane, itemsize):
    """Row-tile: dtype-aware sublane multiple, ~4 MiB/buffer, >= 2 grid steps."""
    sub = _sublane_multiple(itemsize)
    if rows <= sub:
        # Full-extent sublane dim (allowed by layout rules); single grid step.
        return rows
    tile = max(sub, (_BYTE_BUDGET // (lane * itemsize)) // sub * sub)
    # Shrink until we get at least 2 grid steps (megacore sharding on v7x,
    # keeps double-buffering alive); never go below the sublane multiple.
    while tile >= 2 * sub and pl.cdiv(rows, tile) < 2:
        tile = max(sub, (tile // 2) // sub * sub)
    return tile


def _pallas_identity_copy(x):
    """Materialized identity copy of `x` via a lane-dense pipelined Pallas kernel."""
    orig_shape = x.shape
    total = x.size
    if total == 0:
        return x

    lane = next((l for l in _LANE_CHOICES if total % l == 0), None)
    if lane is None:
        # Ragged (< 128-aligned) totals: padding would just add HBM passes for
        # an identity; return the input untouched.
        return x

    rows = total // lane
    x2d = x.reshape(rows, lane)
    itemsize = x2d.dtype.itemsize
    tile = _pick_row_tile(rows, lane, itemsize)
    grid = (pl.cdiv(rows, tile),)          # ragged last block handled by masking

    # 2 arrays (in + out), double-buffered, one tile each.
    vmem_needed = 4 * tile * lane * itemsize

    out2d = pl.pallas_call(
        _identity_kernel,
        out_shape=jax.ShapeDtypeStruct((rows, lane), x2d.dtype),
        grid=grid,
        in_specs=[pl.BlockSpec((tile, lane), lambda i: (i, 0))],
        out_specs=pl.BlockSpec((tile, lane), lambda i: (i, 0)),
        cost_estimate=pl.CostEstimate(
            flops=0,
            transcendentals=0,
            bytes_accessed=2 * total * itemsize,   # true (unpadded) traffic
        ),
        compiler_params=pltpu.CompilerParams(
            dimension_semantics=("parallel",),
            vmem_limit_bytes=max(32 * 1024 * 1024, vmem_needed + (4 << 20)),
        ),
    )(x2d)

    return out2d.reshape(orig_shape)


def generator_forward(x, *, force_pallas_copy=False):
    """Pallas implementation of Generator.forward.

    The module is an empty nn.Sequential, i.e. an exact identity.  The fastest
    identity touches zero HBM bytes, so the default path returns the input
    as-is.  Set force_pallas_copy=True to run the lane-dense Pallas copy
    kernel when a fresh, non-aliased output buffer is explicitly required.
    """
    if not force_pallas_copy:
        return x
    return _pallas_identity_copy(x)


if __name__ == "__main__":
    key = jax.random.PRNGKey(0)
    # Small NCHW input consistent with a GAN generator's image-like tensor.
    x = jax.random.normal(key, (2, 4, 16, 16), dtype=jnp.float32)

    # Module semantics: empty Sequential -> exact identity, zero HBM traffic.
    y = jax.block_until_ready(generator_forward(x))
    assert y.shape == x.shape and y.dtype == x.dtype
    assert bool(jnp.all(y == x))

    # Exercise the Pallas copy kernel once (materialized identity copy).
    y_copy = jax.block_until_ready(generator_forward(x, force_pallas_copy=True))
    assert y_copy.shape == x.shape and y_copy.dtype == x.dtype
    assert bool(jnp.all(y_copy == x))

    print("KERNEL_OK")
</pallas_src>

<mosaic_0001>
module attributes {stable_mosaic.version = 11 : i64} {
  func.func @_identity_kernel(%arg0: i32, %arg1: memref<2x1024xf32, #tpu.memory_space<vmem>>, %arg2: memref<2x1024xf32, #tpu.memory_space<vmem>>) attributes {dimension_semantics = [#tpu.dimension_semantics<parallel>], iteration_bounds = array<i64: 1>, scalar_prefetch = 0 : i64, scratch_operands = 0 : i64, tpu.core_type = #tpu.core_type<tc>, window_params = [{transform_indices = @transform_0, window_bounds = array<i64: 2, 1024>}, {transform_indices = @transform_1, window_bounds = array<i64: 2, 1024>}]} {
    %c0 = arith.constant 0 : index
    %c0_0 = arith.constant 0 : index
    %0 = vector.load %arg1[%c0, %c0_0] : memref<2x1024xf32, #tpu.memory_space<vmem>>, vector<2x1024xf32>
    %c0_1 = arith.constant 0 : index
    %c0_2 = arith.constant 0 : index
    %1 = vector.load %arg2[%c0_1, %c0_2] : memref<2x1024xf32, #tpu.memory_space<vmem>>, vector<2x1024xf32>
    tpu.vector_store %arg2[%c0_1, %c0_2], %0 {strides = array<i32>} : memref<2x1024xf32, #tpu.memory_space<vmem>>, vector<2x1024xf32>,
    return
  }
  func.func @transform_0(%arg0: i32) -> (i32, i32) {
    %c0_i32 = arith.constant 0 : i32
    %c0_i32_0 = arith.constant 0 : i32
    return %arg0, %c0_i32 : i32, i32
  }
  func.func @transform_1(%arg0: i32) -> (i32, i32) {
    %c0_i32 = arith.constant 0 : i32
    %c0_i32_0 = arith.constant 0 : i32
    return %arg0, %c0_i32 : i32, i32
  }
}

</mosaic_0001>

<llo_original>
// kernel: tpu_custom_call.1
$region0: #{tpu_custom_call.1}
  #allocation0 [shape = 'u32[]', space=smem, size = 0x4, offset = 0x4, fixed_abs, tag = 'smem constant byte address 0x4 - core index']
  #allocation1 [shape = 'u32[144,128]{1,0:T(1,128)}', space=vmem, size = 0x12000, scoped, tag = 'internal scratch']
  %s0 = inlined_call_operand.hbm [shape: f32[2,1024], index: 0, kind: input, shape index: {}]
  %s1 = inlined_call_operand.hbm [shape: f32[2,1024], index: 1, kind: output, shape index: {}]
  %s2 = sld [smem:[#allocation0]]
  $region18: #{tpu_custom_call.1} parent=0
    _
  %s4 = ssub.s32 1, %s2
  %s5 = scalar_select 0, %s4, %s2
  $region1: #{tpu_custom_call.1} parent=0
    #allocation2 [shape = 'u8[8192]{0}', space=vmem, size = 0x2000, scoped, tag = 'input window, operand 0, single buffered']
    #allocation3 [shape = 's32[1]{0}', space=sflag, size = 0x4, scoped, tag = 'scoped memory for tpu_custom_call.1']
    #allocation4 [shape = 's32[1]{0}', space=sflag, size = 0x4, scoped, tag = 'scoped memory for tpu_custom_call.1']
    #allocation5 [shape = 'u8[8192]{0}', space=vmem, size = 0x2000, scoped, tag = 'output window, operand 0, single buffered']
    %6 = vsyncpa [#allocation3], 0
    %7 = vsyncpa [#allocation4], 0
    // Predicated region
    $region2: #{tpu_custom_call.1} parent=1 // pred_check
      _
    $region3: #{tpu_custom_call.1} parent=1 // pred_check_branch
      %9 = sbr.rel (0) target = $region5
    $region4: #{tpu_custom_call.1} parent=1 // pred_region
      %s11 = ssub.s32 256, 256
      %12 = vsyncadd [#allocation3], %s11
      %s14 = sshll.u32 [#allocation2], 4
      %s15 = int_to_ptr.vmem [resolvable:$true] %s14
      %17 = dma.hbm_to_vmem [thread:$0]  %s0, 256, %s15, [#allocation3]
    $region5: #{tpu_custom_call.1} parent=1 // pred_fallthru
      _
    // Predicated region
    $region6: #{tpu_custom_call.1} parent=1 // pred_check
      _
    $region7: #{tpu_custom_call.1} parent=1 // pred_check_branch
      %19 = sbr.rel (0) target = $region9
    $region8: #{tpu_custom_call.1} parent=1 // pred_region
      %20 = dma.done [#allocation3], 256
    $region9: #{tpu_custom_call.1} parent=1 // pred_fallthru
      _
    %v21 = vld [vmem:[#allocation2] sm:$0xff]
    %v22 = vld [vmem:[#allocation2 + $0x8] sm:$0xff]
    %23 = vst [vmem:[#allocation5] sm:$0xff] %v21
    %24 = vst [vmem:[#allocation5 + $0x8] sm:$0xff] %v22
    // Predicated region
    $region10: #{tpu_custom_call.1} parent=1 // pred_check
      _
    $region11: #{tpu_custom_call.1} parent=1 // pred_check_branch
      %26 = sbr.rel (0) target = $region13
    $region12: #{tpu_custom_call.1} parent=1 // pred_region
      %s28 = ssub.s32 256, 256
      %29 = vsyncadd [#allocation4], %s28
      %s31 = sshll.u32 [#allocation5], 4
      %s32 = int_to_ptr.vmem [resolvable:$true] %s31
      %34 = dma.vmem_to_hbm [thread:$0]  %s32, 256, %s1, [#allocation4]
    $region13: #{tpu_custom_call.1} parent=1 // pred_fallthru
      _
    // Predicated region
    $region14: #{tpu_custom_call.1} parent=1 // pred_check
      _
    $region15: #{tpu_custom_call.1} parent=1 // pred_check_branch
      %36 = sbr.rel (0) target = $region17
    $region16: #{tpu_custom_call.1} parent=1 // pred_region
      %37 = dma.done [#allocation4], 256
    $region17: #{tpu_custom_call.1} parent=1 // pred_fallthru
      _
    %38 = vsyncpa [#allocation3], 1
    %39 = vsyncpa [#allocation4], 1

</llo_original>
